<compile_context>
chip_gen: v7x
topology: tpu7x:2x2x1
jax: 0.10.0
libtpu: 0.0.40
codegen_flags: <defaults>
</compile_context>

<pallas_src>
import functools

import jax
import jax.numpy as jnp
from jax.experimental import pallas as pl
from jax.experimental.pallas import tpu as pltpu

H = 128  # hidden width from the module spec (nn.Linear(*input_dims, 128))


def _round_up(x, m):
    return ((x + m - 1) // m) * m


def dqn_mlp_kernel(x_ref, w_ref, b_ref, out_ref, *, d_pad):
    """Fused 3-layer MLP forward on one (TB, d_pad) batch tile.

    x_ref   : (TB, d_pad)        bf16
    w_ref   : (d_pad + 2H, H)    bf16   rows [0:d_pad)=W1, [d_pad:d_pad+H)=W2,
                                        [d_pad+H:d_pad+2H)=W3 (zero-padded cols)
    b_ref   : (8, H)             f32    row 0=b1, row 1=b2, row 2=b3 (padded)
    out_ref : (TB, H)            f32    lane-dense Q-values (cols >= n_actions are 0)
    """
    x = x_ref[...]                                    # (TB, d_pad) bf16

    w1 = w_ref[0:d_pad, :]                            # (d_pad, H) bf16
    w2 = w_ref[d_pad:d_pad + H, :]                    # (H, H)     bf16
    w3 = w_ref[d_pad + H:d_pad + 2 * H, :]            # (H, H)     bf16

    b1 = b_ref[0:1, :]                                # (1, H) f32
    b2 = b_ref[1:2, :]
    b3 = b_ref[2:3, :]

    # Layer 1: bf16 MXU matmul, f32 accumulate, f32 bias + ReLU on VPU.
    h1 = jnp.dot(x, w1, preferred_element_type=jnp.float32) + b1
    h1 = jnp.maximum(h1, 0.0)

    # Layer 2
    h2 = jnp.dot(h1.astype(jnp.bfloat16), w2,
                 preferred_element_type=jnp.float32) + b2
    h2 = jnp.maximum(h2, 0.0)

    # Layer 3 (Q-values, no activation)
    q = jnp.dot(h2.astype(jnp.bfloat16), w3,
                preferred_element_type=jnp.float32) + b3

    out_ref[...] = q


def pack_params(params):
    """Pack f32 master params into (bf16 weight slab, f32 bias slab)."""
    d_in = params["W1"].shape[0]
    n_actions = params["W3"].shape[1]
    # bf16 sublane packing is 16 rows per (16,128) tile -> keep slice offsets
    # multiples of 16 so in-kernel static slices are tile-aligned.
    d_pad = _round_up(max(d_in, 16), 16)

    w_pack = jnp.zeros((d_pad + 2 * H, H), jnp.bfloat16)
    w_pack = w_pack.at[:d_in, :].set(params["W1"].astype(jnp.bfloat16))
    w_pack = w_pack.at[d_pad:d_pad + H, :].set(params["W2"].astype(jnp.bfloat16))
    w_pack = w_pack.at[d_pad + H:d_pad + 2 * H, :n_actions].set(
        params["W3"].astype(jnp.bfloat16))

    b_pack = jnp.zeros((8, H), jnp.float32)
    b_pack = b_pack.at[0, :].set(params["b1"].reshape(-1))
    b_pack = b_pack.at[1, :].set(params["b2"].reshape(-1))
    b_pack = b_pack.at[2, :n_actions].set(params["b3"].reshape(-1))

    return {"w": w_pack, "b": b_pack, "d_pad": d_pad,
            "d_in": d_in, "n_actions": n_actions}


def dqn_forward(state, packed):
    """state: (B, D_in) float32 -> Q-values (B, n_actions) float32."""
    B, d_in = state.shape
    assert d_in == packed["d_in"]
    d_pad = packed["d_pad"]
    n_actions = packed["n_actions"]
    w_pack, b_pack = packed["w"], packed["b"]

    # Batch tiling: multiple of 8 sublanes; tile up to 512 rows, "parallel"
    # grid so megacore (v7x) can shard large replay batches.
    TB = min(512, _round_up(B, 8))
    B_pad = _round_up(B, TB)
    nb = B_pad // TB

    x_pad = jnp.zeros((B_pad, d_pad), jnp.bfloat16)
    x_pad = x_pad.at[:B, :d_in].set(state.astype(jnp.bfloat16))

    flops = 2 * B_pad * (d_pad * H + H * H + H * H)
    bytes_accessed = (x_pad.size * 2 + w_pack.size * 2
                      + b_pack.size * 4 + B_pad * H * 4)

    out = pl.pallas_call(
        functools.partial(dqn_mlp_kernel, d_pad=d_pad),
        out_shape=jax.ShapeDtypeStruct((B_pad, H), jnp.float32),
        grid=(nb,),
        in_specs=[
            pl.BlockSpec((TB, d_pad), lambda i: (i, 0)),        # x tile
            pl.BlockSpec(w_pack.shape, lambda i: (0, 0)),       # weights resident
            pl.BlockSpec(b_pack.shape, lambda i: (0, 0)),       # biases resident
        ],
        out_specs=pl.BlockSpec((TB, H), lambda i: (i, 0)),      # lane-dense out
        compiler_params=pltpu.CompilerParams(
            dimension_semantics=("parallel",)),
        cost_estimate=pl.CostEstimate(
            flops=flops, transcendentals=0, bytes_accessed=bytes_accessed),
    )(x_pad, w_pack, b_pack)

    return out[:B, :n_actions]


def init_params(key, input_dims, n_actions, hidden=H):
    """Deterministic init mimicking nn.Linear's U(-1/sqrt(fan_in), 1/sqrt(fan_in))."""
    ks = jax.random.split(key, 6)

    def linear(kw, kb, fan_in, fan_out):
        bound = 1.0 / jnp.sqrt(fan_in)
        W = jax.random.uniform(kw, (fan_in, fan_out), jnp.float32, -bound, bound)
        b = jax.random.uniform(kb, (1, fan_out), jnp.float32, -bound, bound)
        return W, b

    W1, b1 = linear(ks[0], ks[1], input_dims, hidden)
    W2, b2 = linear(ks[2], ks[3], hidden, hidden)
    W3, b3 = linear(ks[4], ks[5], hidden, n_actions)
    return {"W1": W1, "b1": b1, "W2": W2, "b2": b2, "W3": W3, "b3": b3}


def dqn_forward_ref(state, p):
    """Pure-JAX reference using the same bf16-input / f32-accumulate recipe."""
    bf = jnp.bfloat16
    h = jnp.dot(state.astype(bf), p["W1"].astype(bf),
                preferred_element_type=jnp.float32) + p["b1"]
    h = jnp.maximum(h, 0.0)
    h = jnp.dot(h.astype(bf), p["W2"].astype(bf),
                preferred_element_type=jnp.float32) + p["b2"]
    h = jnp.maximum(h, 0.0)
    return jnp.dot(h.astype(bf), p["W3"].astype(bf),
                   preferred_element_type=jnp.float32) + p["b3"]


# TODO(synk): optimizer (Adam), SmoothL1Loss and checkpoint save/load from the
# PyTorch module are training/IO concerns, not part of the forward pass.

if __name__ == "__main__":
    key = jax.random.PRNGKey(0)
    k_param, k_state, k_big = jax.random.split(key, 3)

    batch = 2
    input_dims = 8      # e.g. an 8-dim observation vector
    n_actions = 4

    params = init_params(k_param, input_dims, n_actions)
    packed = pack_params(params)

    # Small per-step inference case (B=2): single grid step, lane-dense store.
    state = jax.random.normal(k_state, (batch, input_dims), jnp.float32)
    q = jax.block_until_ready(dqn_forward(state, packed))
    q_ref = dqn_forward_ref(state, params)
    assert q.shape == (batch, n_actions)
    assert jnp.allclose(q, q_ref, atol=1e-3, rtol=1e-3), "mismatch vs reference (B=2)"

    # Replay-batch case: exercises the batch grid (TB=512, 2 parallel steps).
    big_state = jax.random.normal(k_big, (600, input_dims), jnp.float32)
    q_big = jax.block_until_ready(dqn_forward(big_state, packed))
    q_big_ref = dqn_forward_ref(big_state, params)
    assert q_big.shape == (600, n_actions)
    assert jnp.allclose(q_big, q_big_ref, atol=1e-3, rtol=1e-3), "mismatch vs reference (B=600)"

    print("KERNEL_OK")
</pallas_src>

<mosaic_0001>
module attributes {stable_mosaic.version = 11 : i64} {
  func.func @dqn_mlp_kernel(%arg0: i32, %arg1: memref<8x16xbf16, #tpu.memory_space<vmem>>, %arg2: memref<272x128xbf16, #tpu.memory_space<vmem>>, %arg3: memref<8x128xf32, #tpu.memory_space<vmem>>, %arg4: memref<8x128xf32, #tpu.memory_space<vmem>>) attributes {dimension_semantics = [#tpu.dimension_semantics<parallel>], iteration_bounds = array<i64: 1>, scalar_prefetch = 0 : i64, scratch_operands = 0 : i64, tpu.core_type = #tpu.core_type<tc>, window_params = [{transform_indices = @transform_0, window_bounds = array<i64: 8, 16>}, {pipeline_mode = #tpu.pipeline_mode<synchronous>, transform_indices = @transform_1, window_bounds = array<i64: 272, 128>}, {pipeline_mode = #tpu.pipeline_mode<synchronous>, transform_indices = @transform_2, window_bounds = array<i64: 8, 128>}, {transform_indices = @transform_3, window_bounds = array<i64: 8, 128>}]} {
    %c0 = arith.constant 0 : index
    %c0_0 = arith.constant 0 : index
    %0 = vector.load %arg1[%c0, %c0_0] : memref<8x16xbf16, #tpu.memory_space<vmem>>, vector<8x16xbf16>
    %c0_1 = arith.constant 0 : index
    %c0_2 = arith.constant 0 : index
    %1 = vector.load %arg2[%c0_1, %c0_2] : memref<272x128xbf16, #tpu.memory_space<vmem>>, vector<16x128xbf16>
    %c16 = arith.constant 16 : index
    %c0_3 = arith.constant 0 : index
    %2 = vector.load %arg2[%c16, %c0_3] : memref<272x128xbf16, #tpu.memory_space<vmem>>, vector<128x128xbf16>
    %c144 = arith.constant 144 : index
    %c0_4 = arith.constant 0 : index
    %3 = vector.load %arg2[%c144, %c0_4] : memref<272x128xbf16, #tpu.memory_space<vmem>>, vector<128x128xbf16>
    %c0_5 = arith.constant 0 : index
    %c0_6 = arith.constant 0 : index
    %4 = vector.load %arg3[%c0_5, %c0_6] : memref<8x128xf32, #tpu.memory_space<vmem>>, vector<1x128xf32>
    %c1 = arith.constant 1 : index
    %c0_7 = arith.constant 0 : index
    %5 = vector.load %arg3[%c1, %c0_7] : memref<8x128xf32, #tpu.memory_space<vmem>>, vector<1x128xf32>
    %c2 = arith.constant 2 : index
    %c0_8 = arith.constant 0 : index
    %6 = vector.load %arg3[%c2, %c0_8] : memref<8x128xf32, #tpu.memory_space<vmem>>, vector<1x128xf32>
    %cst = arith.constant dense<0.000000e+00> : vector<8x128xf32>
    %7 = tpu.matmul %0, %1, %cst {dimension_numbers = #tpu.dot_dimension_numbers<[1], [0], [0], [1], [0, 0, 1, 1], [], []>} : vector<8x16xbf16>, vector<16x128xbf16>, vector<8x128xf32> -> vector<8x128xf32>
    %8 = vector.broadcast %4 : vector<1x128xf32> to vector<8x128xf32>
    %9 = arith.addf %7, %8 : vector<8x128xf32>
    %cst_9 = arith.constant 0.000000e+00 : f32
    %10 = vector.broadcast %cst_9 : f32 to vector<8x128xf32>
    %11 = arith.maximumf %9, %10 : vector<8x128xf32>
    %12 = arith.truncf %11 : vector<8x128xf32> to vector<8x128xbf16>
    %cst_10 = arith.constant dense<0.000000e+00> : vector<8x128xf32>
    %13 = tpu.matmul %12, %2, %cst_10 {dimension_numbers = #tpu.dot_dimension_numbers<[1], [0], [0], [1], [0, 0, 1, 1], [], []>} : vector<8x128xbf16>, vector<128x128xbf16>, vector<8x128xf32> -> vector<8x128xf32>
    %14 = vector.broadcast %5 : vector<1x128xf32> to vector<8x128xf32>
    %15 = arith.addf %13, %14 : vector<8x128xf32>
    %cst_11 = arith.constant 0.000000e+00 : f32
    %16 = vector.broadcast %cst_11 : f32 to vector<8x128xf32>
    %17 = arith.maximumf %15, %16 : vector<8x128xf32>
    %18 = arith.truncf %17 : vector<8x128xf32> to vector<8x128xbf16>
    %cst_12 = arith.constant dense<0.000000e+00> : vector<8x128xf32>
    %19 = tpu.matmul %18, %3, %cst_12 {dimension_numbers = #tpu.dot_dimension_numbers<[1], [0], [0], [1], [0, 0, 1, 1], [], []>} : vector<8x128xbf16>, vector<128x128xbf16>, vector<8x128xf32> -> vector<8x128xf32>
    %20 = vector.broadcast %6 : vector<1x128xf32> to vector<8x128xf32>
    %21 = arith.addf %19, %20 : vector<8x128xf32>
    %c0_13 = arith.constant 0 : index
    %c0_14 = arith.constant 0 : index
    %22 = vector.load %arg4[%c0_13, %c0_14] : memref<8x128xf32, #tpu.memory_space<vmem>>, vector<8x128xf32>
    tpu.vector_store %arg4[%c0_13, %c0_14], %21 {strides = array<i32>} : memref<8x128xf32, #tpu.memory_space<vmem>>, vector<8x128xf32>,
    return
  }
  func.func @transform_0(%arg0: i32) -> (i32, i32) {
    %c0_i32 = arith.constant 0 : i32
    %c0_i32_0 = arith.constant 0 : i32
    return %arg0, %c0_i32 : i32, i32
  }
  func.func @transform_1(%arg0: i32) -> (i32, i32) {
    %c0_i32 = arith.constant 0 : i32
    %c0_i32_0 = arith.constant 0 : i32
    %c0_i32_1 = arith.constant 0 : i32
    return %c0_i32, %c0_i32_0 : i32, i32
  }
  func.func @transform_2(%arg0: i32) -> (i32, i32) {
    %c0_i32 = arith.constant 0 : i32
    %c0_i32_0 = arith.constant 0 : i32
    %c0_i32_1 = arith.constant 0 : i32
    return %c0_i32, %c0_i32_0 : i32, i32
  }
  func.func @transform_3(%arg0: i32) -> (i32, i32) {
    %c0_i32 = arith.constant 0 : i32
    %c0_i32_0 = arith.constant 0 : i32
    return %arg0, %c0_i32 : i32, i32
  }
}

</mosaic_0001>

<llo_original>
// kernel: tpu_custom_call.1
$region0: #{tpu_custom_call.1}
  #allocation0 [shape = 'u32[]', space=smem, size = 0x4, offset = 0x4, fixed_abs, tag = 'smem constant byte address 0x4 - core index']
  #allocation1 [shape = 'u32[144,128]{1,0:T(1,128)}', space=vmem, size = 0x12000, scoped, tag = 'internal scratch']
  %s0 = inlined_call_operand.hbm [shape: bf16[8,16], index: 0, kind: input, shape index: {}]
  %s1 = inlined_call_operand.hbm [shape: bf16[272,128], index: 1, kind: input, shape index: {}]
  %s2 = inlined_call_operand.hbm [shape: f32[8,128], index: 2, kind: input, shape index: {}]
  %s3 = inlined_call_operand.hbm [shape: f32[8,128], index: 3, kind: output, shape index: {}]
  %s4 = sld [smem:[#allocation0]]
  $region34: #{tpu_custom_call.1} parent=0
    _
  %s6 = ssub.s32 1, %s4
  %s7 = scalar_select 0, %s6, %s4
  $region1: #{tpu_custom_call.1} parent=0
    #allocation2 [shape = 'u8[2048]{0}', space=vmem, size = 0x800, scoped, tag = 'input window, operand 0, single buffered']
    #allocation3 [shape = 's32[1]{0}', space=sflag, size = 0x4, scoped, tag = 'scoped memory for tpu_custom_call.1']
    #allocation4 [shape = 's32[1]{0}', space=sflag, size = 0x4, scoped, tag = 'scoped memory for tpu_custom_call.1']
    #allocation5 [shape = 'u8[69632]{0}', space=vmem, size = 0x11000, scoped, tag = 'input window, operand 1, single buffered']
    #allocation6 [shape = 's32[1]{0}', space=sflag, size = 0x4, scoped, tag = 'scoped memory for tpu_custom_call.1']
    #allocation7 [shape = 'u8[4096]{0}', space=vmem, size = 0x1000, scoped, tag = 'input window, operand 2, single buffered']
    #allocation8 [shape = 'u8[4096]{0}', space=vmem, size = 0x1000, scoped, tag = 'output window, operand 0, single buffered']
    %8 = vsyncpa [#allocation3], 0
    %9 = vsyncpa [#allocation6], 0
    %10 = vsyncpa [#allocation4], 0
    // Predicated region
    $region2: #{tpu_custom_call.1} parent=1 // pred_check
      _
    $region3: #{tpu_custom_call.1} parent=1 // pred_check_branch
      %12 = sbr.rel (0) target = $region5
    $region4: #{tpu_custom_call.1} parent=1 // pred_region
      %s14 = ssub.s32 64, 64
      %15 = vsyncadd [#allocation3], %s14
      %s17 = sshll.u32 [#allocation2], 4
      %s18 = int_to_ptr.vmem [resolvable:$true] %s17
      %20 = dma.hbm_to_vmem [thread:$0]  %s0, 64, %s18, [#allocation3]
    $region5: #{tpu_custom_call.1} parent=1 // pred_fallthru
      _
    // Predicated region
    $region6: #{tpu_custom_call.1} parent=1 // pred_check
      _
    $region7: #{tpu_custom_call.1} parent=1 // pred_check_branch
      %22 = sbr.rel (0) target = $region9
    $region8: #{tpu_custom_call.1} parent=1 // pred_region
      %s24 = ssub.s32 2176, 2176
      %25 = vsyncadd [#allocation6], %s24
      %s26 = sshll.u32 [#allocation5], 4
      %s27 = int_to_ptr.vmem [resolvable:$true] %s26
      %32 = dma.hbm_to_vmem [thread:$0]  %s1, 2176, %s27, [#allocation6], 64, 64, 4
    $region9: #{tpu_custom_call.1} parent=1 // pred_fallthru
      _
    // Predicated region
    $region10: #{tpu_custom_call.1} parent=1 // pred_check
      _
    $region11: #{tpu_custom_call.1} parent=1 // pred_check_branch
      %34 = sbr.rel (0) target = $region13
    $region12: #{tpu_custom_call.1} parent=1 // pred_region
      %s36 = ssub.s32 128, 128
      %37 = vsyncadd [#allocation6], %s36
      %s39 = sshll.u32 [#allocation7], 4
      %s40 = int_to_ptr.vmem [resolvable:$true] %s39
      %42 = dma.hbm_to_vmem [thread:$0]  %s2, 128, %s40, [#allocation6]
    $region13: #{tpu_custom_call.1} parent=1 // pred_fallthru
      _
    // Predicated region
    $region14: #{tpu_custom_call.1} parent=1 // pred_check
      _
    $region15: #{tpu_custom_call.1} parent=1 // pred_check_branch
      %44 = sbr.rel (0) target = $region17
    $region16: #{tpu_custom_call.1} parent=1 // pred_region
      %45 = dma.done [#allocation3], 64
    $region17: #{tpu_custom_call.1} parent=1 // pred_fallthru
      _
    // Predicated region
    $region18: #{tpu_custom_call.1} parent=1 // pred_check
      _
    $region19: #{tpu_custom_call.1} parent=1 // pred_check_branch
      %47 = sbr.rel (0) target = $region21
    $region20: #{tpu_custom_call.1} parent=1 // pred_region
      %48 = dma.done [#allocation6], 2176
    $region21: #{tpu_custom_call.1} parent=1 // pred_fallthru
      _
    // Predicated region
    $region22: #{tpu_custom_call.1} parent=1 // pred_check
      _
    $region23: #{tpu_custom_call.1} parent=1 // pred_check_branch
      %50 = sbr.rel (0) target = $region25
    $region24: #{tpu_custom_call.1} parent=1 // pred_region
      %51 = dma.done [#allocation6], 128
    $region25: #{tpu_custom_call.1} parent=1 // pred_fallthru
      _
    %v53 = vld [vmem:[#allocation2] sm:$0xf]
    %v54 = vld [vmem:[#allocation5] sm:$0xf]
    %v55 = vld [vmem:[#allocation5 + $0x4] sm:$0xf]
    %v56 = vld [vmem:[#allocation5 + $0x8] sm:$0xf]
    %v57 = vld [vmem:[#allocation5 + $0xc] sm:$0xf]
    %v58 = vld [vmem:[#allocation5 + $0x10] sm:$0xf]
    %v59 = vld [vmem:[#allocation5 + $0x14] sm:$0xf]
    %v60 = vld [vmem:[#allocation5 + $0x18] sm:$0xf]
    %v61 = vld [vmem:[#allocation5 + $0x1c] sm:$0xf]
    %v62 = vld [vmem:[#allocation5 + $0x20] sm:$0xf]
    %v63 = vld [vmem:[#allocation5 + $0x24] sm:$0xf]
    %v64 = vld [vmem:[#allocation5 + $0x28] sm:$0xf]
    %v65 = vld [vmem:[#allocation5 + $0x2c] sm:$0xf]
    %v66 = vld [vmem:[#allocation5 + $0x30] sm:$0xf]
    %v67 = vld [vmem:[#allocation5 + $0x34] sm:$0xf]
    %v68 = vld [vmem:[#allocation5 + $0x38] sm:$0xf]
    %v69 = vld [vmem:[#allocation5 + $0x3c] sm:$0xf]
    %v70 = vld [vmem:[#allocation5 + $0x40] sm:$0xf]
    %v71 = vld [vmem:[#allocation5 + $0x44] sm:$0xf]
    %v72 = vld [vmem:[#allocation5 + $0x48] sm:$0xf]
    %v73 = vld [vmem:[#allocation5 + $0x4c] sm:$0xf]
    %v74 = vld [vmem:[#allocation5 + $0x50] sm:$0xf]
    %v75 = vld [vmem:[#allocation5 + $0x54] sm:$0xf]
    %v76 = vld [vmem:[#allocation5 + $0x58] sm:$0xf]
    %v77 = vld [vmem:[#allocation5 + $0x5c] sm:$0xf]
    %v78 = vld [vmem:[#allocation5 + $0x60] sm:$0xf]
    %v79 = vld [vmem:[#allocation5 + $0x64] sm:$0xf]
    %v80 = vld [vmem:[#allocation5 + $0x68] sm:$0xf]
    %v81 = vld [vmem:[#allocation5 + $0x6c] sm:$0xf]
    %v82 = vld [vmem:[#allocation5 + $0x70] sm:$0xf]
    %v83 = vld [vmem:[#allocation5 + $0x74] sm:$0xf]
    %v84 = vld [vmem:[#allocation5 + $0x78] sm:$0xf]
    %v85 = vld [vmem:[#allocation5 + $0x7c] sm:$0xf]
    %v86 = vld [vmem:[#allocation5 + $0x80] sm:$0xf]
    %v87 = vld [vmem:[#allocation5 + $0x84] sm:$0xf]
    %v88 = vld [vmem:[#allocation7] sm:$0x1]
    %v89 = vld [vmem:[#allocation7 + $0x1] sm:$0x1]
    %v90 = vld [vmem:[#allocation7 + $0x2] sm:$0x1]
    %v91 = vlaneseq
    %v92 = vshrl.u32 %v91, 7
    %v93 = vsub.s32 0, %v92
    %v94 = vrot.slane %v88, %v93
    %v97 = vunpack.c.l.b16 %v54
    %v98 = vunpack.c.l.b16 %v55
    %v99 = vpack.c.b16 %v98, %v97
    %vm101 = vcmask 130048
    %v103 = vsel %vm101, %v53, 0
    %105 = vmatprep.subr.bf16.mxu0 0
    %106 = vmatpush1.bf16.msra.mxu0 %v99
    %107 = vmatprep.subr.bf16.mxu0 0
    %108 = vmatpush1.bf16.msra.mxu0 0
    %109 = vmatprep.subr.bf16.mxu0 0
    %110 = vmatpush1.bf16.msra.mxu0 0
    %111 = vmatprep.subr.bf16.mxu0 0
    %112 = vmatpush1.bf16.msra.mxu0 0
    %113 = vmatprep.subr.bf16.mxu0 0
    %114 = vmatpush1.bf16.msra.mxu0 0
    %115 = vmatprep.subr.bf16.mxu0 0
    %116 = vmatpush1.bf16.msra.mxu0 0
    %117 = vmatprep.subr.bf16.mxu0 0
    %118 = vmatpush1.bf16.msra.mxu0 0
    %119 = vmatprep.subr.bf16.mxu0 0
    %120 = vmatpush1.bf16.msra.mxu0 0
    %121 = vmatprep.subr.bf16.mxu0 0
    %122 = vmatpush1.bf16.msra.mxu0 0
    %123 = vmatprep.subr.bf16.mxu0 0
    %124 = vmatpush1.bf16.msra.mxu0 0
    %125 = vmatprep.subr.bf16.mxu0 0
    %126 = vmatpush1.bf16.msra.mxu0 0
    %127 = vmatprep.subr.bf16.mxu0 0
    %128 = vmatpush1.bf16.msra.mxu0 0
    %129 = vmatprep.subr.bf16.mxu0 0
    %130 = vmatpush1.bf16.msra.mxu0 0
    %131 = vmatprep.subr.bf16.mxu0 0
    %132 = vmatpush1.bf16.msra.mxu0 0
    %133 = vmatprep.subr.bf16.mxu0 0
    %134 = vmatpush1.bf16.msra.mxu0 0
    %135 = vmatprep.subr.bf16.mxu0 0
    %136 = vmatpush1.bf16.msra.mxu0 0
    %137 = vmatprep.mubr.bf16.mxu0 0
    %138 = vmatmul.mubr.bf16.gmra.mrb[0].mxu0 %v103
    %v139 = vpop.f32.mrb[0].mxu0
    %v140 = vadd.f32 %v94, %v139
    %v141 = vpop.f32.mrb[0].mxu0
    %v142 = vpop.f32.mrb[0].mxu0
    %v143 = vpop.f32.mrb[0].mxu0
    %144 = vdwg.mxu0
    %v145 = vmax.f32 %v140, 0.0
    %v146 = vpack.c.bf16 %v145, %v145
    %v147 = vlaneseq
    %v148 = vshrl.u32 %v147, 7
    %v149 = vsub.s32 0, %v148
    %v150 = vrot.slane %v89, %v149
    %v167 = vunpack.c.l.b16 %v56
    %v168 = vunpack.c.l.b16 %v57
    %v169 = vunpack.c.l.b16 %v58
    %v170 = vunpack.c.l.b16 %v59
    %v171 = vunpack.c.l.b16 %v60
    %v172 = vunpack.c.l.b16 %v61
    %v173 = vunpack.c.l.b16 %v62
    %v174 = vunpack.c.l.b16 %v63
    %v175 = vunpack.c.l.b16 %v64
    %v176 = vunpack.c.l.b16 %v65
    %v177 = vunpack.c.l.b16 %v66
    %v178 = vunpack.c.l.b16 %v67
    %v179 = vunpack.c.l.b16 %v68
    %v180 = vunpack.c.l.b16 %v69
    %v181 = vunpack.c.l.b16 %v70
    %v182 = vunpack.c.l.b16 %v71
    %v183 = vpack.c.b16 %v168, %v167
    %v184 = vpack.c.b16 %v170, %v169
    %v185 = vpack.c.b16 %v172, %v171
    %v186 = vpack.c.b16 %v174, %v173
    %v187 = vpack.c.b16 %v176, %v175
    %v188 = vpack.c.b16 %v178, %v177
    %v189 = vpack.c.b16 %v180, %v179
    %v190 = vpack.c.b16 %v182, %v181
    %199 = vmatprep.subr.bf16.mxu0 0
    %200 = vmatpush1.bf16.msra.mxu0 %v183
    %201 = vmatprep.subr.bf16.mxu0 0
    %202 = vmatpush1.bf16.msra.mxu0 %v184
    %203 = vmatprep.subr.bf16.mxu0 0
    %204 = vmatpush1.bf16.msra.mxu0 %v185
    %205 = vmatprep.subr.bf16.mxu0 0
    %206 = vmatpush1.bf16.msra.mxu0 %v186
    %207 = vmatprep.subr.bf16.mxu0 0
    %208 = vmatpush1.bf16.msra.mxu0 %v187
    %209 = vmatprep.subr.bf16.mxu0 0
    %210 = vmatpush1.bf16.msra.mxu0 %v188
    %211 = vmatprep.subr.bf16.mxu0 0
    %212 = vmatpush1.bf16.msra.mxu0 %v189
    %213 = vmatprep.subr.bf16.mxu0 0
    %214 = vmatpush1.bf16.msra.mxu0 %v190
    %215 = vmatprep.subr.bf16.mxu0 0
    %216 = vmatpush1.bf16.msra.mxu0 0
    %217 = vmatprep.subr.bf16.mxu0 0
    %218 = vmatpush1.bf16.msra.mxu0 0
    %219 = vmatprep.subr.bf16.mxu0 0
    %220 = vmatpush1.bf16.msra.mxu0 0
    %221 = vmatprep.subr.bf16.mxu0 0
    %222 = vmatpush1.bf16.msra.mxu0 0
    %223 = vmatprep.subr.bf16.mxu0 0
    %224 = vmatpush1.bf16.msra.mxu0 0
    %225 = vmatprep.subr.bf16.mxu0 0
    %226 = vmatpush1.bf16.msra.mxu0 0
    %227 = vmatprep.subr.bf16.mxu0 0
    %228 = vmatpush1.bf16.msra.mxu0 0
    %229 = vmatprep.subr.bf16.mxu0 0
    %230 = vmatpush1.bf16.msra.mxu0 0
    %231 = vmatprep.mubr.bf16.mxu0 0
    %232 = vmatmul.mubr.bf16.gmra.mrb[0].mxu0 %v146
    %v233 = vpop.f32.mrb[0].mxu0
    %v234 = vadd.f32 %v150, %v233
    %v235 = vpop.f32.mrb[0].mxu0
    %v236 = vpop.f32.mrb[0].mxu0
    %v237 = vpop.f32.mrb[0].mxu0
    %238 = vdwg.mxu0
    %v239 = vmax.f32 %v234, 0.0
    %v240 = vpack.c.bf16 %v239, %v239
    %v241 = vlaneseq
    %v242 = vshrl.u32 %v241, 7
    %v243 = vsub.s32 0, %v242
    %v244 = vrot.slane %v90, %v243
    %v261 = vunpack.c.l.b16 %v72
    %v262 = vunpack.c.l.b16 %v73
    %v263 = vunpack.c.l.b16 %v74
    %v264 = vunpack.c.l.b16 %v75
    %v265 = vunpack.c.l.b16 %v76
    %v266 = vunpack.c.l.b16 %v77
    %v267 = vunpack.c.l.b16 %v78
    %v268 = vunpack.c.l.b16 %v79
    %v269 = vunpack.c.l.b16 %v80
    %v270 = vunpack.c.l.b16 %v81
    %v271 = vunpack.c.l.b16 %v82
    %v272 = vunpack.c.l.b16 %v83
    %v273 = vunpack.c.l.b16 %v84
    %v274 = vunpack.c.l.b16 %v85
    %v275 = vunpack.c.l.b16 %v86
    %v276 = vunpack.c.l.b16 %v87
    %v277 = vpack.c.b16 %v262, %v261
    %v278 = vpack.c.b16 %v264, %v263
    %v279 = vpack.c.b16 %v266, %v265
    %v280 = vpack.c.b16 %v268, %v267
    %v281 = vpack.c.b16 %v270, %v269
    %v282 = vpack.c.b16 %v272, %v271
    %v283 = vpack.c.b16 %v274, %v273
    %v284 = vpack.c.b16 %v276, %v275
    %293 = vmatprep.subr.bf16.mxu0 0
    %294 = vmatpush1.bf16.msra.mxu0 %v277
    %295 = vmatprep.subr.bf16.mxu0 0
    %296 = vmatpush1.bf16.msra.mxu0 %v278
    %297 = vmatprep.subr.bf16.mxu0 0
    %298 = vmatpush1.bf16.msra.mxu0 %v279
    %299 = vmatprep.subr.bf16.mxu0 0
    %300 = vmatpush1.bf16.msra.mxu0 %v280
    %301 = vmatprep.subr.bf16.mxu0 0
    %302 = vmatpush1.bf16.msra.mxu0 %v281
    %303 = vmatprep.subr.bf16.mxu0 0
    %304 = vmatpush1.bf16.msra.mxu0 %v282
    %305 = vmatprep.subr.bf16.mxu0 0
    %306 = vmatpush1.bf16.msra.mxu0 %v283
    %307 = vmatprep.subr.bf16.mxu0 0
    %308 = vmatpush1.bf16.msra.mxu0 %v284
    %309 = vmatprep.subr.bf16.mxu0 0
    %310 = vmatpush1.bf16.msra.mxu0 0
    %311 = vmatprep.subr.bf16.mxu0 0
    %312 = vmatpush1.bf16.msra.mxu0 0
    %313 = vmatprep.subr.bf16.mxu0 0
    %314 = vmatpush1.bf16.msra.mxu0 0
    %315 = vmatprep.subr.bf16.mxu0 0
    %316 = vmatpush1.bf16.msra.mxu0 0
    %317 = vmatprep.subr.bf16.mxu0 0
    %318 = vmatpush1.bf16.msra.mxu0 0
    %319 = vmatprep.subr.bf16.mxu0 0
    %320 = vmatpush1.bf16.msra.mxu0 0
    %321 = vmatprep.subr.bf16.mxu0 0
    %322 = vmatpush1.bf16.msra.mxu0 0
    %323 = vmatprep.subr.bf16.mxu0 0
    %324 = vmatpush1.bf16.msra.mxu0 0
    %325 = vmatprep.mubr.bf16.mxu0 0
    %326 = vmatmul.mubr.bf16.gmra.mrb[0].mxu0 %v240
    %v327 = vpop.f32.mrb[0].mxu0
    %v328 = vadd.f32 %v244, %v327
    %v329 = vpop.f32.mrb[0].mxu0
    %v330 = vpop.f32.mrb[0].mxu0
    %v331 = vpop.f32.mrb[0].mxu0
    %332 = vdwg.mxu0
    %333 = vst [vmem:[#allocation8] sm:$0xff] %v328
    // Predicated region
    $region26: #{tpu_custom_call.1} parent=1 // pred_check
      _
    $region27: #{tpu_custom_call.1} parent=1 // pred_check_branch
      %335 = sbr.rel (0) target = $region29
    $region28: #{tpu_custom_call.1} parent=1 // pred_region
      %s337 = ssub.s32 128, 128
      %338 = vsyncadd [#allocation4], %s337
      %s340 = sshll.u32 [#allocation8], 4
      %s341 = int_to_ptr.vmem [resolvable:$true] %s340
      %343 = dma.vmem_to_hbm [thread:$0]  %s341, 128, %s3, [#allocation4]
    $region29: #{tpu_custom_call.1} parent=1 // pred_fallthru
      _
    // Predicated region
    $region30: #{tpu_custom_call.1} parent=1 // pred_check
      _
    $region31: #{tpu_custom_call.1} parent=1 // pred_check_branch
      %345 = sbr.rel (0) target = $region33
    $region32: #{tpu_custom_call.1} parent=1 // pred_region
      %346 = dma.done [#allocation4], 128
    $region33: #{tpu_custom_call.1} parent=1 // pred_fallthru
      _
    %347 = vsyncpa [#allocation3], 1
    %348 = vsyncpa [#allocation6], 1
    %349 = vsyncpa [#allocation4], 1

</llo_original>
